<compile_context>
chip_gen: v6e
topology: v6e:2x2x1
jax: 0.10.0
libtpu: 0.0.40
codegen_flags: <defaults>
</compile_context>

<pallas_src>
import functools
import math

import jax
import jax.numpy as jnp
from jax.experimental import pallas as pl
from jax.experimental.pallas import tpu as pltpu


def token_embedding_kernel(tok_ref, emb_ref, out_ref, *, scale, vocab_size, pack):
    """One grid step: gather + scale `rows*pack` token embeddings via one MXU matmul.

    tok_ref: (rows, pack) int32     token ids, `pack` tokens per output row
    emb_ref: (pack*V, pack*E)       block-diagonal table (full, VMEM-resident)
    out_ref: (rows, pack*E)         packed output rows (lane-dense when E < 128)
    """
    ids = tok_ref[...]
    rows = ids.shape[0]
    pv = pack * vocab_size
    col = jax.lax.broadcasted_iota(jnp.int32, (rows, pv), 1)
    onehot = jnp.zeros((rows, pv), dtype=emb_ref.dtype)
    scale_c = jnp.asarray(scale, dtype=emb_ref.dtype)
    # Scaled one-hot: onehot[r, j*V + v] = scale if ids[r, j] == v else 0.
    # Static loop over the tiny pack factor (unrolled at trace time); the bound
    # check keeps out-of-range ids from leaking into a neighbouring slot.
    for j in range(pack):
        idj = ids[:, j:j + 1]                                        # (rows, 1)
        hit = (col == idj + j * vocab_size) & (idj >= 0) & (idj < vocab_size)
        onehot = jnp.where(hit, scale_c, onehot)
    out_ref[...] = jnp.dot(
        onehot, emb_ref[...], preferred_element_type=jnp.float32
    ).astype(out_ref.dtype)


def _round_up(x, m):
    return ((x + m - 1) // m) * m


def token_embedding(tokens, emb_table, *, block_tokens=256):
    """Equivalent of TokenEmbedding.forward: embedding(tokens) * sqrt(emb_size).

    block_tokens: tokens per grid step.  128 is a good choice on v5e,
    256 on v6e/v7x; keep it <= ~256 (one-hot vreg pressure) and a multiple of 8.
    """
    B, S = tokens.shape
    V, E = emb_table.shape
    N = B * S
    scale = math.sqrt(E)

    # Lane packing factor: pack tokens per output row so the output block's
    # last dim is a full multiple of 128 lanes.  E >= 128 needs no packing.
    pack = 128 // E if (E < 128 and 128 % E == 0) else 1

    # Effective tile: multiple of 8*pack (sublane constraint on the packed
    # row count), clamped so tiny inputs don't over-pad.
    unit = 8 * pack
    block = _round_up(min(block_tokens, _round_up(N, unit)), unit)
    n_pad = _round_up(N, block)

    tok_flat = tokens.reshape(N).astype(jnp.int32)
    if n_pad != N:
        tok_flat = jnp.pad(tok_flat, (0, n_pad - N))   # pad with id 0, sliced off below
    tok_packed = tok_flat.reshape(n_pad // pack, pack)

    if pack == 1:
        emb_big = emb_table
    else:
        # Block-diagonal table: emb_big[j*V + v, j*E + e] = emb_table[v, e].
        eye = jnp.eye(pack, dtype=emb_table.dtype)
        emb_big = (eye[:, None, :, None] * emb_table[None, :, None, :]).reshape(
            pack * V, pack * E
        )

    rows_per_block = block // pack
    grid = (n_pad // block,)

    out_packed = pl.pallas_call(
        functools.partial(token_embedding_kernel, scale=scale, vocab_size=V, pack=pack),
        out_shape=jax.ShapeDtypeStruct((n_pad // pack, pack * E), emb_table.dtype),
        grid_spec=pltpu.PrefetchScalarGridSpec(
            num_scalar_prefetch=0,
            grid=grid,
            in_specs=[
                pl.BlockSpec((rows_per_block, pack), lambda i: (i, 0)),
                pl.BlockSpec((pack * V, pack * E), lambda i: (0, 0)),
            ],
            out_specs=pl.BlockSpec((rows_per_block, pack * E), lambda i: (i, 0)),
        ),
        compiler_params=pltpu.CompilerParams(dimension_semantics=("parallel",)),
    )(tok_packed, emb_big)

    # Row-major reshape (zero-cost) undoes the lane packing; slice drops padding.
    out_flat = out_packed.reshape(n_pad, E)[:N]
    return out_flat.reshape(B, S, E)


if __name__ == "__main__":
    key = jax.random.PRNGKey(0)
    k_emb1, k_tok1, k_emb2, k_tok2 = jax.random.split(key, 4)

    # Case 1: shapes consistent with the module (SMILES vocab, E < 128 -> packed path).
    V1, E1, B1, S1 = 40, 32, 2, 8
    emb1 = jax.random.normal(k_emb1, (V1, E1), dtype=jnp.float32)   # nn.Embedding init: N(0,1)
    tok1 = jax.random.randint(k_tok1, (B1, S1), 0, V1, dtype=jnp.int32)
    out1 = jax.block_until_ready(token_embedding(tok1, emb1))
    ref1 = emb1[tok1] * math.sqrt(E1)
    assert out1.shape == (B1, S1, E1)
    assert jnp.allclose(out1, ref1, atol=1e-4, rtol=1e-4), "mismatch vs reference (packed path)"

    # Case 2: E >= 128 (no packing), N not a multiple of the tile (padding), multi-step grid.
    V2, E2, B2, S2 = 40, 128, 2, 100
    emb2 = jax.random.normal(k_emb2, (V2, E2), dtype=jnp.float32)
    tok2 = jax.random.randint(k_tok2, (B2, S2), 0, V2, dtype=jnp.int32)
    out2 = jax.block_until_ready(token_embedding(tok2, emb2, block_tokens=64))
    ref2 = emb2[tok2] * math.sqrt(E2)
    assert out2.shape == (B2, S2, E2)
    assert jnp.allclose(out2, ref2, atol=1e-4, rtol=1e-4), "mismatch vs reference (plain path)"

    print("KERNEL_OK")
</pallas_src>

<mosaic_0001>
module attributes {stable_mosaic.version = 11 : i64} {
  func.func @token_embedding_kernel(%arg0: i32, %arg1: memref<8x4xi32, #tpu.memory_space<vmem>>, %arg2: memref<160x128xf32, #tpu.memory_space<vmem>>, %arg3: memref<8x128xf32, #tpu.memory_space<vmem>>) attributes {dimension_semantics = [#tpu.dimension_semantics<parallel>], iteration_bounds = array<i64: 1>, scalar_prefetch = 0 : i64, scratch_operands = 0 : i64, tpu.core_type = #tpu.core_type<tc>, window_params = [{transform_indices = @transform_0, window_bounds = array<i64: 8, 4>}, {pipeline_mode = #tpu.pipeline_mode<synchronous>, transform_indices = @transform_1, window_bounds = array<i64: 160, 128>}, {transform_indices = @transform_2, window_bounds = array<i64: 8, 128>}]} {
    %c0 = arith.constant 0 : index
    %c0_0 = arith.constant 0 : index
    %0 = vector.load %arg1[%c0, %c0_0] : memref<8x4xi32, #tpu.memory_space<vmem>>, vector<8x4xi32>
    %1 = tpu.iota {dimensions = array<i32: 1>} : vector<8x160xi32>
    %cst = arith.constant 0.000000e+00 : f32
    %2 = vector.broadcast %cst : f32 to vector<8x160xf32>
    %3 = vector.extract_strided_slice %0 {offsets = [0, 0], sizes = [8, 1], strides = [1, 1]} : vector<8x4xi32> to vector<8x1xi32>
    %c0_i32 = arith.constant 0 : i32
    %4 = vector.broadcast %c0_i32 : i32 to vector<8x1xi32>
    %5 = arith.addi %3, %4 : vector<8x1xi32>
    %6 = vector.broadcast %5 : vector<8x1xi32> to vector<8x160xi32>
    %7 = arith.cmpi eq, %1, %6 : vector<8x160xi32>
    %c0_i32_1 = arith.constant 0 : i32
    %8 = vector.broadcast %c0_i32_1 : i32 to vector<8x1xi32>
    %9 = arith.cmpi sge, %3, %8 : vector<8x1xi32>
    %10 = vector.broadcast %9 : vector<8x1xi1> to vector<8x160xi1>
    %11 = arith.andi %7, %10 : vector<8x160xi1>
    %c40_i32 = arith.constant 40 : i32
    %12 = vector.broadcast %c40_i32 : i32 to vector<8x1xi32>
    %13 = arith.cmpi slt, %3, %12 : vector<8x1xi32>
    %14 = vector.broadcast %13 : vector<8x1xi1> to vector<8x160xi1>
    %15 = arith.andi %11, %14 : vector<8x160xi1>
    %cst_2 = arith.constant 5.65685415 : f32
    %16 = vector.broadcast %cst_2 : f32 to vector<8x160xf32>
    %17 = arith.select %15, %16, %2 : vector<8x160xi1>, vector<8x160xf32>
    %18 = vector.extract_strided_slice %0 {offsets = [0, 1], sizes = [8, 1], strides = [1, 1]} : vector<8x4xi32> to vector<8x1xi32>
    %c40_i32_3 = arith.constant 40 : i32
    %19 = vector.broadcast %c40_i32_3 : i32 to vector<8x1xi32>
    %20 = arith.addi %18, %19 : vector<8x1xi32>
    %21 = vector.broadcast %20 : vector<8x1xi32> to vector<8x160xi32>
    %22 = arith.cmpi eq, %1, %21 : vector<8x160xi32>
    %c0_i32_4 = arith.constant 0 : i32
    %23 = vector.broadcast %c0_i32_4 : i32 to vector<8x1xi32>
    %24 = arith.cmpi sge, %18, %23 : vector<8x1xi32>
    %25 = vector.broadcast %24 : vector<8x1xi1> to vector<8x160xi1>
    %26 = arith.andi %22, %25 : vector<8x160xi1>
    %c40_i32_5 = arith.constant 40 : i32
    %27 = vector.broadcast %c40_i32_5 : i32 to vector<8x1xi32>
    %28 = arith.cmpi slt, %18, %27 : vector<8x1xi32>
    %29 = vector.broadcast %28 : vector<8x1xi1> to vector<8x160xi1>
    %30 = arith.andi %26, %29 : vector<8x160xi1>
    %cst_6 = arith.constant 5.65685415 : f32
    %31 = vector.broadcast %cst_6 : f32 to vector<8x160xf32>
    %32 = arith.select %30, %31, %17 : vector<8x160xi1>, vector<8x160xf32>
    %33 = vector.extract_strided_slice %0 {offsets = [0, 2], sizes = [8, 1], strides = [1, 1]} : vector<8x4xi32> to vector<8x1xi32>
    %c80_i32 = arith.constant 80 : i32
    %34 = vector.broadcast %c80_i32 : i32 to vector<8x1xi32>
    %35 = arith.addi %33, %34 : vector<8x1xi32>
    %36 = vector.broadcast %35 : vector<8x1xi32> to vector<8x160xi32>
    %37 = arith.cmpi eq, %1, %36 : vector<8x160xi32>
    %c0_i32_7 = arith.constant 0 : i32
    %38 = vector.broadcast %c0_i32_7 : i32 to vector<8x1xi32>
    %39 = arith.cmpi sge, %33, %38 : vector<8x1xi32>
    %40 = vector.broadcast %39 : vector<8x1xi1> to vector<8x160xi1>
    %41 = arith.andi %37, %40 : vector<8x160xi1>
    %c40_i32_8 = arith.constant 40 : i32
    %42 = vector.broadcast %c40_i32_8 : i32 to vector<8x1xi32>
    %43 = arith.cmpi slt, %33, %42 : vector<8x1xi32>
    %44 = vector.broadcast %43 : vector<8x1xi1> to vector<8x160xi1>
    %45 = arith.andi %41, %44 : vector<8x160xi1>
    %cst_9 = arith.constant 5.65685415 : f32
    %46 = vector.broadcast %cst_9 : f32 to vector<8x160xf32>
    %47 = arith.select %45, %46, %32 : vector<8x160xi1>, vector<8x160xf32>
    %48 = vector.extract_strided_slice %0 {offsets = [0, 3], sizes = [8, 1], strides = [1, 1]} : vector<8x4xi32> to vector<8x1xi32>
    %c120_i32 = arith.constant 120 : i32
    %49 = vector.broadcast %c120_i32 : i32 to vector<8x1xi32>
    %50 = arith.addi %48, %49 : vector<8x1xi32>
    %51 = vector.broadcast %50 : vector<8x1xi32> to vector<8x160xi32>
    %52 = arith.cmpi eq, %1, %51 : vector<8x160xi32>
    %c0_i32_10 = arith.constant 0 : i32
    %53 = vector.broadcast %c0_i32_10 : i32 to vector<8x1xi32>
    %54 = arith.cmpi sge, %48, %53 : vector<8x1xi32>
    %55 = vector.broadcast %54 : vector<8x1xi1> to vector<8x160xi1>
    %56 = arith.andi %52, %55 : vector<8x160xi1>
    %c40_i32_11 = arith.constant 40 : i32
    %57 = vector.broadcast %c40_i32_11 : i32 to vector<8x1xi32>
    %58 = arith.cmpi slt, %48, %57 : vector<8x1xi32>
    %59 = vector.broadcast %58 : vector<8x1xi1> to vector<8x160xi1>
    %60 = arith.andi %56, %59 : vector<8x160xi1>
    %cst_12 = arith.constant 5.65685415 : f32
    %61 = vector.broadcast %cst_12 : f32 to vector<8x160xf32>
    %62 = arith.select %60, %61, %47 : vector<8x160xi1>, vector<8x160xf32>
    %c0_13 = arith.constant 0 : index
    %c0_14 = arith.constant 0 : index
    %63 = vector.load %arg2[%c0_13, %c0_14] : memref<160x128xf32, #tpu.memory_space<vmem>>, vector<160x128xf32>
    %cst_15 = arith.constant dense<0.000000e+00> : vector<8x128xf32>
    %64 = tpu.matmul %62, %63, %cst_15 {dimension_numbers = #tpu.dot_dimension_numbers<[1], [0], [0], [1], [0, 0, 1, 1], [], []>} : vector<8x160xf32>, vector<160x128xf32>, vector<8x128xf32> -> vector<8x128xf32>
    %c0_16 = arith.constant 0 : index
    %c0_17 = arith.constant 0 : index
    %65 = vector.load %arg3[%c0_16, %c0_17] : memref<8x128xf32, #tpu.memory_space<vmem>>, vector<8x128xf32>
    tpu.vector_store %arg3[%c0_16, %c0_17], %64 {strides = array<i32>} : memref<8x128xf32, #tpu.memory_space<vmem>>, vector<8x128xf32>,
    return
  }
  func.func @transform_0(%arg0: i32) -> (i32, i32) {
    %c0_i32 = arith.constant 0 : i32
    %c0_i32_0 = arith.constant 0 : i32
    return %arg0, %c0_i32 : i32, i32
  }
  func.func @transform_1(%arg0: i32) -> (i32, i32) {
    %c0_i32 = arith.constant 0 : i32
    %c0_i32_0 = arith.constant 0 : i32
    %c0_i32_1 = arith.constant 0 : i32
    return %c0_i32, %c0_i32_0 : i32, i32
  }
  func.func @transform_2(%arg0: i32) -> (i32, i32) {
    %c0_i32 = arith.constant 0 : i32
    %c0_i32_0 = arith.constant 0 : i32
    return %arg0, %c0_i32 : i32, i32
  }
}

</mosaic_0001>

<llo_original>
// kernel: tpu_custom_call.1
$region0: #{tpu_custom_call.1}
  #allocation0 [shape = 'u32[]', space=smem, size = 0x4, offset = 0x4, fixed_abs, tag = 'smem constant byte address 0x4 - core index']
  #allocation1 [shape = 'u32[144,128]{1,0:T(1,128)}', space=vmem, size = 0x12000, scoped, tag = 'internal scratch']
  %s0 = inlined_call_operand.vmem [shape: s32[8,4], index: 0, kind: input, shape index: {}]
  %s1 = inlined_call_operand.hbm [shape: f32[160,128], index: 1, kind: input, shape index: {}]
  %s2 = inlined_call_operand.hbm [shape: f32[8,128], index: 2, kind: output, shape index: {}]
  %s3 = sld [smem:[#allocation0]]
  $region22: #{tpu_custom_call.1} parent=0
    _
  %s5 = ssub.s32 1, %s3
  %s6 = scalar_select 0, %s5, %s3
  $region1: #{tpu_custom_call.1} parent=0
    #allocation2 [shape = 'u8[81920]{0}', space=vmem, size = 0x14000, scoped, tag = 'input window, operand 1, single buffered']
    #allocation3 [shape = 's32[1]{0}', space=sflag, size = 0x4, scoped, tag = 'scoped memory for tpu_custom_call.1']
    #allocation4 [shape = 's32[1]{0}', space=sflag, size = 0x4, scoped, tag = 'scoped memory for tpu_custom_call.1']
    #allocation5 [shape = 'u8[4096]{0}', space=vmem, size = 0x1000, scoped, tag = 'output window, operand 0, single buffered']
    %7 = vsyncpa [#allocation3], 0
    %8 = vsyncpa [#allocation4], 0
    // Predicated region
    $region2: #{tpu_custom_call.1} parent=1 // pred_check
      _
    $region3: #{tpu_custom_call.1} parent=1 // pred_check_branch
      %10 = sbr.rel (0) target = $region5
    $region4: #{tpu_custom_call.1} parent=1 // pred_region
      _
    $region5: #{tpu_custom_call.1} parent=1 // pred_fallthru
      _
    // Predicated region
    $region6: #{tpu_custom_call.1} parent=1 // pred_check
      _
    $region7: #{tpu_custom_call.1} parent=1 // pred_check_branch
      %12 = sbr.rel (0) target = $region9
    $region8: #{tpu_custom_call.1} parent=1 // pred_region
      %s14 = ssub.s32 2560, 2560
      %15 = vsyncadd [#allocation3], %s14
      %s16 = sshll.u32 [#allocation2], 4
      %s17 = int_to_ptr.vmem [resolvable:$true] %s16
      %22 = dma.hbm_to_vmem [thread:$0]  %s1, 2560, %s17, [#allocation3], 128, 128, 8
    $region9: #{tpu_custom_call.1} parent=1 // pred_fallthru
      _
    // Predicated region
    $region10: #{tpu_custom_call.1} parent=1 // pred_check
      _
    $region11: #{tpu_custom_call.1} parent=1 // pred_check_branch
      %24 = sbr.rel (0) target = $region13
    $region12: #{tpu_custom_call.1} parent=1 // pred_region
      %25 = dma.done [#allocation3], 2560
    $region13: #{tpu_custom_call.1} parent=1 // pred_fallthru
      _
    %v26 = vld [vmem:[%s0] sm:$0xff]
    %v27 = vlaneseq
    %v28 = vand.u32 %v27, 127
    %v29 = vadd.s32 %v28, 128
    %30 = vset.pattern.permute.xlu0 0
    %31 = vperm.xlu0 %30, %v26
    %v32 = vpop.permute.xlu0 %31
    %vm33 = vcmp.eq.s32.totalorder %v28, %v32
    %vm34 = vcmp.eq.s32.totalorder %v29, %v32
    %vm35 = vcmp.ge.s32.totalorder %v26, 0
    %v36 = vsel %vm35, 1, 0
    %37 = vset.pattern.permute.xlu0 0
    %38 = vperm.xlu0 %37, %v36
    %v39 = vpop.permute.xlu0 %38
    %vm40 = vcmp.eq.s32.totalorder %v39, 1
    %vm41 = vmand %vm33, %vm40
    %vm42 = vmand %vm34, %vm40
    %vm43 = vcmp.lt.s32.totalorder %v26, 40
    %v44 = vsel %vm43, 1, 0
    %45 = vset.pattern.permute.xlu0 0
    %46 = vperm.xlu0 %45, %v44
    %v47 = vpop.permute.xlu0 %46
    %vm48 = vcmp.eq.s32.totalorder %v47, 1
    %vm49 = vmand %vm41, %vm48
    %vm50 = vmand %vm42, %vm48
    %v51 = vsel %vm49, 5.656854, 0.0
    %v52 = vsel %vm50, 5.656854, 0.0
    %v53 = vadd.s32 %v26, 40
    %54 = vset.pattern.permute.xlu0 1
    %55 = vperm.xlu0 %54, %v53
    %v56 = vpop.permute.xlu0 %55
    %vm57 = vcmp.eq.s32.totalorder %v28, %v56
    %vm58 = vcmp.eq.s32.totalorder %v29, %v56
    %59 = vset.pattern.permute.xlu0 1
    %60 = vperm.xlu0 %59, %v36
    %v61 = vpop.permute.xlu0 %60
    %vm62 = vcmp.eq.s32.totalorder %v61, 1
    %vm63 = vmand %vm57, %vm62
    %vm64 = vmand %vm58, %vm62
    %65 = vset.pattern.permute.xlu0 1
    %66 = vperm.xlu0 %65, %v44
    %v67 = vpop.permute.xlu0 %66
    %vm68 = vcmp.eq.s32.totalorder %v67, 1
    %vm69 = vmand %vm63, %vm68
    %vm70 = vmand %vm64, %vm68
    %v71 = vsel %vm69, 5.656854, %v51
    %v72 = vsel %vm70, 5.656854, %v52
    %v73 = vadd.s32 %v26, 80
    %74 = vset.pattern.permute.xlu0 2
    %75 = vperm.xlu0 %74, %v73
    %v76 = vpop.permute.xlu0 %75
    %vm77 = vcmp.eq.s32.totalorder %v28, %v76
    %vm78 = vcmp.eq.s32.totalorder %v29, %v76
    %79 = vset.pattern.permute.xlu0 2
    %80 = vperm.xlu0 %79, %v36
    %v81 = vpop.permute.xlu0 %80
    %vm82 = vcmp.eq.s32.totalorder %v81, 1
    %vm83 = vmand %vm77, %vm82
    %vm84 = vmand %vm78, %vm82
    %85 = vset.pattern.permute.xlu0 2
    %86 = vperm.xlu0 %85, %v44
    %v87 = vpop.permute.xlu0 %86
    %vm88 = vcmp.eq.s32.totalorder %v87, 1
    %vm89 = vmand %vm83, %vm88
    %vm90 = vmand %vm84, %vm88
    %v91 = vsel %vm89, 5.656854, %v71
    %v92 = vsel %vm90, 5.656854, %v72
    %v93 = vadd.s32 %v26, 120
    %94 = vset.pattern.permute.xlu0 3
    %95 = vperm.xlu0 %94, %v93
    %v96 = vpop.permute.xlu0 %95
    %vm97 = vcmp.eq.s32.totalorder %v28, %v96
    %vm98 = vcmp.eq.s32.totalorder %v29, %v96
    %99 = vset.pattern.permute.xlu0 3
    %100 = vperm.xlu0 %99, %v36
    %v101 = vpop.permute.xlu0 %100
    %vm102 = vcmp.eq.s32.totalorder %v101, 1
    %vm103 = vmand %vm97, %vm102
    %vm104 = vmand %vm98, %vm102
    %105 = vset.pattern.permute.xlu0 3
    %106 = vperm.xlu0 %105, %v44
    %v107 = vpop.permute.xlu0 %106
    %vm108 = vcmp.eq.s32.totalorder %v107, 1
    %vm109 = vmand %vm103, %vm108
    %vm110 = vmand %vm104, %vm108
    %v111 = vsel %vm109, 5.656854, %v91
    %v112 = vsel %vm110, 5.656854, %v92
    %v113 = vld [vmem:[#allocation2] sm:$0xff]
    %v114 = vld [vmem:[#allocation2 + $0x8] sm:$0xff]
    %v115 = vld [vmem:[#allocation2 + $0x10] sm:$0xff]
    %v116 = vld [vmem:[#allocation2 + $0x18] sm:$0xff]
    %v117 = vld [vmem:[#allocation2 + $0x20] sm:$0xff]
    %v118 = vld [vmem:[#allocation2 + $0x28] sm:$0xff]
    %v119 = vld [vmem:[#allocation2 + $0x30] sm:$0xff]
    %v120 = vld [vmem:[#allocation2 + $0x38] sm:$0xff]
    %v121 = vld [vmem:[#allocation2 + $0x40] sm:$0xff]
    %v122 = vld [vmem:[#allocation2 + $0x48] sm:$0xff]
    %v123 = vld [vmem:[#allocation2 + $0x50] sm:$0xff]
    %v124 = vld [vmem:[#allocation2 + $0x58] sm:$0xff]
    %v125 = vld [vmem:[#allocation2 + $0x60] sm:$0xff]
    %v126 = vld [vmem:[#allocation2 + $0x68] sm:$0xff]
    %v127 = vld [vmem:[#allocation2 + $0x70] sm:$0xff]
    %v128 = vld [vmem:[#allocation2 + $0x78] sm:$0xff]
    %v129 = vld [vmem:[#allocation2 + $0x80] sm:$0xff]
    %v130 = vld [vmem:[#allocation2 + $0x88] sm:$0xff]
    %v131 = vld [vmem:[#allocation2 + $0x90] sm:$0xff]
    %v132 = vld [vmem:[#allocation2 + $0x98] sm:$0xff]
    %vm133 = vcmask 261120
    %v135 = vsel %vm133, %v112, 0
    %137 = vmatprep.subr.mxu0 0.0
    %138 = vmatpush1.msra.mxu0 %v128
    %139 = vmatprep.subr.mxu0 0.0
    %140 = vmatpush1.msra.mxu0 %v127
    %141 = vmatprep.subr.mxu0 0.0
    %142 = vmatpush1.msra.mxu0 %v126
    %143 = vmatprep.subr.mxu0 0.0
    %144 = vmatpush1.msra.mxu0 %v125
    %145 = vmatprep.subr.mxu0 0.0
    %146 = vmatpush1.msra.mxu0 %v124
    %147 = vmatprep.subr.mxu0 0.0
    %148 = vmatpush1.msra.mxu0 %v123
    %149 = vmatprep.subr.mxu0 0.0
    %150 = vmatpush1.msra.mxu0 %v122
    %151 = vmatprep.subr.mxu0 0.0
    %152 = vmatpush1.msra.mxu0 %v121
    %153 = vmatprep.subr.mxu0 0.0
    %154 = vmatpush1.msra.mxu0 %v120
    %155 = vmatprep.subr.mxu0 0.0
    %156 = vmatpush1.msra.mxu0 %v119
    %157 = vmatprep.subr.mxu0 0.0
    %158 = vmatpush1.msra.mxu0 %v118
    %159 = vmatprep.subr.mxu0 0.0
    %160 = vmatpush1.msra.mxu0 %v117
    %161 = vmatprep.subr.mxu0 0.0
    %162 = vmatpush1.msra.mxu0 %v116
    %163 = vmatprep.subr.mxu0 0.0
    %164 = vmatpush1.msra.mxu0 %v115
    %165 = vmatprep.subr.mxu0 0.0
    %166 = vmatpush1.msra.mxu0 %v114
    %167 = vmatprep.subr.mxu0 0.0
    %168 = vmatpush1.msra.mxu0 %v113
    %169 = vmatprep.subr.mxu0 0.0
    %170 = vmatpush2.msra.mxu0 0.0
    %171 = vmatprep.subr.mxu0 0.0
    %172 = vmatpush2.msra.mxu0 0.0
    %173 = vmatprep.subr.mxu0 0.0
    %174 = vmatpush2.msra.mxu0 0.0
    %175 = vmatprep.subr.mxu0 0.0
    %176 = vmatpush2.msra.mxu0 0.0
    %177 = vmatprep.subr.mxu0 0.0
    %178 = vmatpush2.msra.mxu0 0.0
    %179 = vmatprep.subr.mxu0 0.0
    %180 = vmatpush2.msra.mxu0 0.0
    %181 = vmatprep.subr.mxu0 0.0
    %182 = vmatpush2.msra.mxu0 0.0
    %183 = vmatprep.subr.mxu0 0.0
    %184 = vmatpush2.msra.mxu0 0.0
    %185 = vmatprep.subr.mxu0 0.0
    %186 = vmatpush2.msra.mxu0 0.0
    %187 = vmatprep.subr.mxu0 0.0
    %188 = vmatpush2.msra.mxu0 0.0
    %189 = vmatprep.subr.mxu0 0.0
    %190 = vmatpush2.msra.mxu0 0.0
    %191 = vmatprep.subr.mxu0 0.0
    %192 = vmatpush2.msra.mxu0 0.0
    %193 = vmatprep.subr.mxu0 0.0
    %194 = vmatpush2.msra.mxu0 %v132
    %195 = vmatprep.subr.mxu0 0.0
    %196 = vmatpush2.msra.mxu0 %v131
    %197 = vmatprep.subr.mxu0 0.0
    %198 = vmatpush2.msra.mxu0 %v130
    %199 = vmatprep.subr.mxu0 0.0
    %200 = vmatpush2.msra.mxu0 %v129
    %201 = vmatprep.mubr.f32.mxu0 %v135
    %202 = vmatmul.mubr.f32.gmra.mxu0 %v111
    %v203 = vpop.f32.mrf.mxu0
    %v204 = vadd.f32 0.0, %v203
    %v205 = vpop.f32.mrf.mxu0
    %206 = vdwg.mxu0
    %207 = vst [vmem:[#allocation5] sm:$0xff] %v204
    // Predicated region
    $region14: #{tpu_custom_call.1} parent=1 // pred_check
      _
    $region15: #{tpu_custom_call.1} parent=1 // pred_check_branch
      %209 = sbr.rel (0) target = $region17
    $region16: #{tpu_custom_call.1} parent=1 // pred_region
      %s211 = ssub.s32 128, 128
      %212 = vsyncadd [#allocation4], %s211
      %s214 = sshll.u32 [#allocation5], 4
      %s215 = int_to_ptr.vmem [resolvable:$true] %s214
      %217 = dma.vmem_to_hbm [thread:$0]  %s215, 128, %s2, [#allocation4]
    $region17: #{tpu_custom_call.1} parent=1 // pred_fallthru
      _
    // Predicated region
    $region18: #{tpu_custom_call.1} parent=1 // pred_check
      _
    $region19: #{tpu_custom_call.1} parent=1 // pred_check_branch
      %219 = sbr.rel (0) target = $region21
    $region20: #{tpu_custom_call.1} parent=1 // pred_region
      %220 = dma.done [#allocation4], 128
    $region21: #{tpu_custom_call.1} parent=1 // pred_fallthru
      _
    %221 = vsyncpa [#allocation3], 1
    %222 = vsyncpa [#allocation4], 1

</llo_original>
